<compile_context>
chip_gen: v7x
topology: tpu7x:2x2x1
jax: 0.10.0
libtpu: 0.0.40
codegen_flags: <defaults>
</compile_context>

<pallas_src>
import functools

import jax
import jax.numpy as jnp
from jax.experimental import pallas as pl
from jax.experimental.pallas import tpu as pltpu


def _fused_conv_block_kernel(x_ref, wcol_ref, w1_ref, b1_ref, w2_ref, b2_ref,
                             o_ref, xf_ref, p1_ref, yf_ref, p2_ref,
                             *, width, compute_dtype):
    # Per grid step (= one batch element):
    #   x_ref   : (1, Cin, H*W)      flattened NCHW input
    #   wcol_ref: (1, H*W) int32     column index (w = q mod W) per output pos
    #   w1_ref  : (Cmid, 9*Cin)      conv1 weights, col order (ky*3+kx)*Cin+ci
    #   b1_ref  : (Cmid, 1)
    #   w2_ref  : (Cout, 9*Cmid)
    #   b2_ref  : (Cout, 1)
    #   o_ref   : (1, Cout, H*W)     lane-dense output
    #   xf_ref  : (Cin,  H*W+2W+2)   flat input  + zero margins (the "halo")
    #   p1_ref  : (9*Cin,  H*W)      im2col patches for conv1
    #   yf_ref  : (Cmid, H*W+2W+2)   flat intermediate + zero margins (VMEM only)
    #   p2_ref  : (9*Cmid, H*W)      im2col patches for conv2
    W = width
    cin = x_ref.shape[1]
    hw = x_ref.shape[2]
    cmid = w1_ref.shape[0]

    # Column-validity masks for the left / right taps (kx = 0 / 2). Hoisted
    # once; reused by both layers.
    wcol = wcol_ref[...]                 # (1, H*W)
    left_ok = wcol >= 1                  # input column w-1 is in range
    right_ok = wcol <= (W - 2)           # input column w+1 is in range

    def build_patches(src_ref, p_ref, c):
        # src_ref holds the flattened image at lane offset W+1 with >= W+1
        # zeros on each side, so for tap (ky, kx) the contiguous slice starting
        # at ky*W + kx is exactly the (h+ky-1, w+kx-1) neighbour for every
        # output position; row overflow lands in the zero margins, column
        # overflow is killed by the kx masks.  No reshapes/relayouts needed.
        for ky in range(3):
            for kx in range(3):
                t = ky * 3 + kx
                s = ky * W + kx                      # static lane offset
                sl = src_ref[:, s:s + hw]            # (c, H*W)
                if kx == 0:
                    sl = jnp.where(left_ok, sl, 0.0)
                elif kx == 2:
                    sl = jnp.where(right_ok, sl, 0.0)
                p_ref[t * c:(t + 1) * c, :] = sl

    def conv_layer(w_ref, b_ref, p_ref):
        # Single MXU dot per layer: (Co, 9*Ci) @ (9*Ci, H*W), f32 accumulate,
        # fused bias + ReLU epilogue (kept in f32).
        y = jnp.dot(w_ref[...].astype(compute_dtype),
                    p_ref[...].astype(compute_dtype),
                    preferred_element_type=jnp.float32)
        return jnp.maximum(y + b_ref[...].astype(jnp.float32), 0.0)

    # ---------------- layer 1: conv + ReLU ----------------
    xf_ref[...] = jnp.zeros_like(xf_ref)
    xf_ref[:, W + 1:W + 1 + hw] = x_ref[0].astype(jnp.float32)
    build_patches(xf_ref, p1_ref, cin)
    y1 = conv_layer(w1_ref, b1_ref, p1_ref)          # (Cmid, H*W)

    # ---------------- layer 2: conv + ReLU (intermediate stays on-chip) ------
    yf_ref[...] = jnp.zeros_like(yf_ref)
    yf_ref[:, W + 1:W + 1 + hw] = y1
    build_patches(yf_ref, p2_ref, cmid)
    y2 = conv_layer(w2_ref, b2_ref, p2_ref)          # (Cout, H*W)

    o_ref[0] = y2.astype(o_ref.dtype)


def conv_block_forward(x_nchw, params, *, compute_dtype=jnp.float32):
    """Fused ConvBlock forward. x_nchw: (N, Cin, H, W) -> (N, Cout, H, W).

    params use the PyTorch layout: (w1 (Cmid,Cin,3,3), b1 (Cmid,),
                                    w2 (Cout,Cmid,3,3), b2 (Cout,)).
    compute_dtype=jnp.bfloat16 trades a little accuracy for v5e/v6e MXU rate;
    accumulation is always f32.
    """
    w1, b1, w2, b2 = params
    N, cin, H, W = x_nchw.shape
    cmid = w1.shape[0]
    cout = w2.shape[0]
    hw = H * W
    m = hw + 2 * (W + 1)                 # flat buffer: data + zero margins

    # Free, metadata-only flattening of the contiguous spatial dims (no pad,
    # no transpose, no extra HBM traffic).
    x_flat = x_nchw.reshape(N, cin, hw)

    # Tiny one-time weight repack: (Co, Ci, 3, 3) -> (Co, 9*Ci) with column
    # order (ky*3+kx)*Ci + ci, matching the kernel's im2col row order.
    w1m = jnp.transpose(w1, (0, 2, 3, 1)).reshape(cmid, 9 * cin)
    w2m = jnp.transpose(w2, (0, 2, 3, 1)).reshape(cout, 9 * cmid)
    b1c = b1.reshape(cmid, 1)
    b2c = b2.reshape(cout, 1)

    # Constant per-position column index (folded by XLA; ~1 KiB).
    wcol = (jnp.arange(hw, dtype=jnp.int32) % W).reshape(1, hw)

    # Conservative VMEM budget: double-buffered blocks + scratch, with margin.
    itemsize = x_nchw.dtype.itemsize
    block_bytes = (cin * hw + cout * hw) * itemsize + (
        hw + w1m.size + w2m.size + cmid + cout) * 4
    scratch_bytes = ((cin + cmid) * m + 9 * (cin + cmid) * hw) * 4
    vmem_limit = int(min(max(2 * (2 * block_bytes + scratch_bytes), 8 << 20),
                         48 << 20))

    kernel = functools.partial(
        _fused_conv_block_kernel, width=W, compute_dtype=compute_dtype)

    out_flat = pl.pallas_call(
        kernel,
        out_shape=jax.ShapeDtypeStruct((N, cout, hw), x_nchw.dtype),
        grid_spec=pltpu.PrefetchScalarGridSpec(
            num_scalar_prefetch=0,
            grid=(N,),
            in_specs=[
                pl.BlockSpec((1, cin, hw), lambda n: (n, 0, 0)),
                pl.BlockSpec((1, hw), lambda n: (0, 0)),
                pl.BlockSpec((cmid, 9 * cin), lambda n: (0, 0)),
                pl.BlockSpec((cmid, 1), lambda n: (0, 0)),
                pl.BlockSpec((cout, 9 * cmid), lambda n: (0, 0)),
                pl.BlockSpec((cout, 1), lambda n: (0, 0)),
            ],
            out_specs=pl.BlockSpec((1, cout, hw), lambda n: (n, 0, 0)),
            scratch_shapes=[
                pltpu.VMEM((cin, m), jnp.float32),        # flat input + halo
                pltpu.VMEM((9 * cin, hw), jnp.float32),   # conv1 patches
                pltpu.VMEM((cmid, m), jnp.float32),       # flat intermediate
                pltpu.VMEM((9 * cmid, hw), jnp.float32),  # conv2 patches
            ],
        ),
        compiler_params=pltpu.CompilerParams(
            dimension_semantics=("parallel",),
            vmem_limit_bytes=vmem_limit,
        ),
    )(x_flat, wcol, w1m, b1c, w2m, b2c)

    # Contiguous split of the last dim -> metadata-only, back to NCHW.
    return out_flat.reshape(N, cout, H, W)


def init_conv_block_params(key, in_channels, out_channels, dtype=jnp.float32):
    """PyTorch-layout params with Conv2d-default-like uniform init."""
    k1, k2, k3, k4 = jax.random.split(key, 4)
    bound1 = 1.0 / ((in_channels * 9) ** 0.5)
    bound2 = 1.0 / ((out_channels * 9) ** 0.5)
    w1 = jax.random.uniform(k1, (out_channels, in_channels, 3, 3), dtype,
                            minval=-bound1, maxval=bound1)
    b1 = jax.random.uniform(k2, (out_channels,), dtype,
                            minval=-bound1, maxval=bound1)
    w2 = jax.random.uniform(k3, (out_channels, out_channels, 3, 3), dtype,
                            minval=-bound2, maxval=bound2)
    b2 = jax.random.uniform(k4, (out_channels,), dtype,
                            minval=-bound2, maxval=bound2)
    return (w1, b1, w2, b2)


def _reference_forward(x_nchw, params):
    """Pure-JAX reference (lax conv, OIHW weights) for correctness checking."""
    w1, b1, w2, b2 = params

    def conv_relu(x, w, b):
        y = jax.lax.conv_general_dilated(
            x, w, window_strides=(1, 1), padding=((1, 1), (1, 1)),
            dimension_numbers=("NCHW", "OIHW", "NCHW"))
        y = y + b.reshape(1, -1, 1, 1)
        return jnp.maximum(y, 0.0)

    return conv_relu(conv_relu(x_nchw, w1, b1), w2, b2)


if __name__ == "__main__":
    key = jax.random.PRNGKey(0)
    k_x, k_p = jax.random.split(key)

    N, Cin, Cout, H, W = 2, 4, 8, 16, 16
    x = jax.random.normal(k_x, (N, Cin, H, W), jnp.float32)
    params = init_conv_block_params(k_p, Cin, Cout)

    out = conv_block_forward(x, params)
    out = jax.block_until_ready(out)

    ref = _reference_forward(x, params)
    assert out.shape == (N, Cout, H, W)
    assert jnp.allclose(out, ref, atol=2e-4, rtol=2e-4), (
        float(jnp.max(jnp.abs(out - ref))))

    print("KERNEL_OK")
</pallas_src>

<mosaic_0001>
module attributes {stable_mosaic.version = 11 : i64} {
  func.func @_fused_conv_block_kernel(%arg0: i32, %arg1: memref<1x4x256xf32, #tpu.memory_space<vmem>>, %arg2: memref<1x256xi32, #tpu.memory_space<vmem>>, %arg3: memref<8x36xf32, #tpu.memory_space<vmem>>, %arg4: memref<8x1xf32, #tpu.memory_space<vmem>>, %arg5: memref<8x72xf32, #tpu.memory_space<vmem>>, %arg6: memref<8x1xf32, #tpu.memory_space<vmem>>, %arg7: memref<1x8x256xf32, #tpu.memory_space<vmem>>, %arg8: memref<4x290xf32, #tpu.memory_space<vmem>>, %arg9: memref<36x256xf32, #tpu.memory_space<vmem>>, %arg10: memref<8x290xf32, #tpu.memory_space<vmem>>, %arg11: memref<72x256xf32, #tpu.memory_space<vmem>>) attributes {dimension_semantics = [#tpu.dimension_semantics<parallel>], iteration_bounds = array<i64: 2>, scalar_prefetch = 0 : i64, scratch_operands = 4 : i64, tpu.core_type = #tpu.core_type<tc>, window_params = [{transform_indices = @transform_0, window_bounds = array<i64: 1, 4, 256>}, {pipeline_mode = #tpu.pipeline_mode<synchronous>, transform_indices = @transform_1, window_bounds = array<i64: 1, 256>}, {pipeline_mode = #tpu.pipeline_mode<synchronous>, transform_indices = @transform_2, window_bounds = array<i64: 8, 36>}, {pipeline_mode = #tpu.pipeline_mode<synchronous>, transform_indices = @transform_3, window_bounds = array<i64: 8, 1>}, {pipeline_mode = #tpu.pipeline_mode<synchronous>, transform_indices = @transform_4, window_bounds = array<i64: 8, 72>}, {pipeline_mode = #tpu.pipeline_mode<synchronous>, transform_indices = @transform_5, window_bounds = array<i64: 8, 1>}, {transform_indices = @transform_6, window_bounds = array<i64: 1, 8, 256>}]} {
    %c0 = arith.constant 0 : index
    %c0_0 = arith.constant 0 : index
    %0 = vector.load %arg2[%c0, %c0_0] : memref<1x256xi32, #tpu.memory_space<vmem>>, vector<1x256xi32>
    %c1_i32 = arith.constant 1 : i32
    %1 = vector.broadcast %c1_i32 : i32 to vector<1x256xi32>
    %2 = arith.cmpi sge, %0, %1 : vector<1x256xi32>
    %c14_i32 = arith.constant 14 : i32
    %3 = vector.broadcast %c14_i32 : i32 to vector<1x256xi32>
    %4 = arith.cmpi sle, %0, %3 : vector<1x256xi32>
    %cst = arith.constant 0.000000e+00 : f32
    %5 = vector.broadcast %cst : f32 to vector<4x290xf32>
    %c0_1 = arith.constant 0 : index
    %c0_2 = arith.constant 0 : index
    %6 = vector.load %arg8[%c0_1, %c0_2] : memref<4x290xf32, #tpu.memory_space<vmem>>, vector<4x290xf32>
    tpu.vector_store %arg8[%c0_1, %c0_2], %5 {strides = array<i32>} : memref<4x290xf32, #tpu.memory_space<vmem>>, vector<4x290xf32>,
    %c0_3 = arith.constant 0 : index
    %c0_4 = arith.constant 0 : index
    %c0_5 = arith.constant 0 : index
    %7 = vector.load %arg1[%c0_3, %c0_4, %c0_5] : memref<1x4x256xf32, #tpu.memory_space<vmem>>, vector<1x4x256xf32>
    %8 = vector.shape_cast %7 : vector<1x4x256xf32> to vector<4x256xf32>
    %c0_6 = arith.constant 0 : index
    %c17 = arith.constant 17 : index
    %9 = vector.load %arg8[%c0_6, %c17] : memref<4x290xf32, #tpu.memory_space<vmem>>, vector<4x256xf32>
    tpu.vector_store %arg8[%c0_6, %c17], %8 {strides = array<i32>} : memref<4x290xf32, #tpu.memory_space<vmem>>, vector<4x256xf32>,
    %c0_7 = arith.constant 0 : index
    %c0_8 = arith.constant 0 : index
    %10 = vector.load %arg8[%c0_7, %c0_8] : memref<4x290xf32, #tpu.memory_space<vmem>>, vector<4x256xf32>
    %cst_9 = arith.constant 0.000000e+00 : f32
    %11 = vector.shape_cast %2 : vector<1x256xi1> to vector<1x256xi1>
    %12 = vector.broadcast %11 : vector<1x256xi1> to vector<4x256xi1>
    %13 = vector.broadcast %cst_9 : f32 to vector<4x256xf32>
    %14 = arith.select %12, %10, %13 : vector<4x256xi1>, vector<4x256xf32>
    %c0_10 = arith.constant 0 : index
    %c0_11 = arith.constant 0 : index
    %15 = vector.load %arg9[%c0_10, %c0_11] : memref<36x256xf32, #tpu.memory_space<vmem>>, vector<4x256xf32>
    tpu.vector_store %arg9[%c0_10, %c0_11], %14 {strides = array<i32>} : memref<36x256xf32, #tpu.memory_space<vmem>>, vector<4x256xf32>,
    %c0_12 = arith.constant 0 : index
    %c1 = arith.constant 1 : index
    %16 = vector.load %arg8[%c0_12, %c1] : memref<4x290xf32, #tpu.memory_space<vmem>>, vector<4x256xf32>
    %c4 = arith.constant 4 : index
    %c0_13 = arith.constant 0 : index
    %17 = vector.load %arg9[%c4, %c0_13] : memref<36x256xf32, #tpu.memory_space<vmem>>, vector<4x256xf32>
    tpu.vector_store %arg9[%c4, %c0_13], %16 {strides = array<i32>} : memref<36x256xf32, #tpu.memory_space<vmem>>, vector<4x256xf32>,
    %c0_14 = arith.constant 0 : index
    %c2 = arith.constant 2 : index
    %18 = vector.load %arg8[%c0_14, %c2] : memref<4x290xf32, #tpu.memory_space<vmem>>, vector<4x256xf32>
    %cst_15 = arith.constant 0.000000e+00 : f32
    %19 = vector.shape_cast %4 : vector<1x256xi1> to vector<1x256xi1>
    %20 = vector.broadcast %19 : vector<1x256xi1> to vector<4x256xi1>
    %21 = vector.broadcast %cst_15 : f32 to vector<4x256xf32>
    %22 = arith.select %20, %18, %21 : vector<4x256xi1>, vector<4x256xf32>
    %c8 = arith.constant 8 : index
    %c0_16 = arith.constant 0 : index
    %23 = vector.load %arg9[%c8, %c0_16] : memref<36x256xf32, #tpu.memory_space<vmem>>, vector<4x256xf32>
    tpu.vector_store %arg9[%c8, %c0_16], %22 {strides = array<i32>} : memref<36x256xf32, #tpu.memory_space<vmem>>, vector<4x256xf32>,
    %c0_17 = arith.constant 0 : index
    %c16 = arith.constant 16 : index
    %24 = vector.load %arg8[%c0_17, %c16] : memref<4x290xf32, #tpu.memory_space<vmem>>, vector<4x256xf32>
    %cst_18 = arith.constant 0.000000e+00 : f32
    %25 = vector.shape_cast %2 : vector<1x256xi1> to vector<1x256xi1>
    %26 = vector.broadcast %25 : vector<1x256xi1> to vector<4x256xi1>
    %27 = vector.broadcast %cst_18 : f32 to vector<4x256xf32>
    %28 = arith.select %26, %24, %27 : vector<4x256xi1>, vector<4x256xf32>
    %c12 = arith.constant 12 : index
    %c0_19 = arith.constant 0 : index
    %29 = vector.load %arg9[%c12, %c0_19] : memref<36x256xf32, #tpu.memory_space<vmem>>, vector<4x256xf32>
    tpu.vector_store %arg9[%c12, %c0_19], %28 {strides = array<i32>} : memref<36x256xf32, #tpu.memory_space<vmem>>, vector<4x256xf32>,
    %c0_20 = arith.constant 0 : index
    %c17_21 = arith.constant 17 : index
    %30 = vector.load %arg8[%c0_20, %c17_21] : memref<4x290xf32, #tpu.memory_space<vmem>>, vector<4x256xf32>
    %c16_22 = arith.constant 16 : index
    %c0_23 = arith.constant 0 : index
    %31 = vector.load %arg9[%c16_22, %c0_23] : memref<36x256xf32, #tpu.memory_space<vmem>>, vector<4x256xf32>
    tpu.vector_store %arg9[%c16_22, %c0_23], %30 {strides = array<i32>} : memref<36x256xf32, #tpu.memory_space<vmem>>, vector<4x256xf32>,
    %c0_24 = arith.constant 0 : index
    %c18 = arith.constant 18 : index
    %32 = vector.load %arg8[%c0_24, %c18] : memref<4x290xf32, #tpu.memory_space<vmem>>, vector<4x256xf32>
    %cst_25 = arith.constant 0.000000e+00 : f32
    %33 = vector.shape_cast %4 : vector<1x256xi1> to vector<1x256xi1>
    %34 = vector.broadcast %33 : vector<1x256xi1> to vector<4x256xi1>
    %35 = vector.broadcast %cst_25 : f32 to vector<4x256xf32>
    %36 = arith.select %34, %32, %35 : vector<4x256xi1>, vector<4x256xf32>
    %c20 = arith.constant 20 : index
    %c0_26 = arith.constant 0 : index
    %37 = vector.load %arg9[%c20, %c0_26] : memref<36x256xf32, #tpu.memory_space<vmem>>, vector<4x256xf32>
    tpu.vector_store %arg9[%c20, %c0_26], %36 {strides = array<i32>} : memref<36x256xf32, #tpu.memory_space<vmem>>, vector<4x256xf32>,
    %c0_27 = arith.constant 0 : index
    %c32 = arith.constant 32 : index
    %38 = vector.load %arg8[%c0_27, %c32] : memref<4x290xf32, #tpu.memory_space<vmem>>, vector<4x256xf32>
    %cst_28 = arith.constant 0.000000e+00 : f32
    %39 = vector.shape_cast %2 : vector<1x256xi1> to vector<1x256xi1>
    %40 = vector.broadcast %39 : vector<1x256xi1> to vector<4x256xi1>
    %41 = vector.broadcast %cst_28 : f32 to vector<4x256xf32>
    %42 = arith.select %40, %38, %41 : vector<4x256xi1>, vector<4x256xf32>
    %c24 = arith.constant 24 : index
    %c0_29 = arith.constant 0 : index
    %43 = vector.load %arg9[%c24, %c0_29] : memref<36x256xf32, #tpu.memory_space<vmem>>, vector<4x256xf32>
    tpu.vector_store %arg9[%c24, %c0_29], %42 {strides = array<i32>} : memref<36x256xf32, #tpu.memory_space<vmem>>, vector<4x256xf32>,
    %c0_30 = arith.constant 0 : index
    %c33 = arith.constant 33 : index
    %44 = vector.load %arg8[%c0_30, %c33] : memref<4x290xf32, #tpu.memory_space<vmem>>, vector<4x256xf32>
    %c28 = arith.constant 28 : index
    %c0_31 = arith.constant 0 : index
    %45 = vector.load %arg9[%c28, %c0_31] : memref<36x256xf32, #tpu.memory_space<vmem>>, vector<4x256xf32>
    tpu.vector_store %arg9[%c28, %c0_31], %44 {strides = array<i32>} : memref<36x256xf32, #tpu.memory_space<vmem>>, vector<4x256xf32>,
    %c0_32 = arith.constant 0 : index
    %c34 = arith.constant 34 : index
    %46 = vector.load %arg8[%c0_32, %c34] : memref<4x290xf32, #tpu.memory_space<vmem>>, vector<4x256xf32>
    %cst_33 = arith.constant 0.000000e+00 : f32
    %47 = vector.shape_cast %4 : vector<1x256xi1> to vector<1x256xi1>
    %48 = vector.broadcast %47 : vector<1x256xi1> to vector<4x256xi1>
    %49 = vector.broadcast %cst_33 : f32 to vector<4x256xf32>
    %50 = arith.select %48, %46, %49 : vector<4x256xi1>, vector<4x256xf32>
    %c32_34 = arith.constant 32 : index
    %c0_35 = arith.constant 0 : index
    %51 = vector.load %arg9[%c32_34, %c0_35] : memref<36x256xf32, #tpu.memory_space<vmem>>, vector<4x256xf32>
    tpu.vector_store %arg9[%c32_34, %c0_35], %50 {strides = array<i32>} : memref<36x256xf32, #tpu.memory_space<vmem>>, vector<4x256xf32>,
    %c0_36 = arith.constant 0 : index
    %c0_37 = arith.constant 0 : index
    %52 = vector.load %arg3[%c0_36, %c0_37] : memref<8x36xf32, #tpu.memory_space<vmem>>, vector<8x36xf32>
    %c0_38 = arith.constant 0 : index
    %c0_39 = arith.constant 0 : index
    %53 = vector.load %arg9[%c0_38, %c0_39] : memref<36x256xf32, #tpu.memory_space<vmem>>, vector<36x256xf32>
    %cst_40 = arith.constant dense<0.000000e+00> : vector<8x256xf32>
    %54 = tpu.matmul %52, %53, %cst_40 {dimension_numbers = #tpu.dot_dimension_numbers<[1], [0], [0], [1], [0, 0, 1, 1], [], []>} : vector<8x36xf32>, vector<36x256xf32>, vector<8x256xf32> -> vector<8x256xf32>
    %c0_41 = arith.constant 0 : index
    %c0_42 = arith.constant 0 : index
    %55 = vector.load %arg4[%c0_41, %c0_42] : memref<8x1xf32, #tpu.memory_space<vmem>>, vector<8x1xf32>
    %56 = vector.broadcast %55 : vector<8x1xf32> to vector<8x256xf32>
    %57 = arith.addf %54, %56 : vector<8x256xf32>
    %cst_43 = arith.constant 0.000000e+00 : f32
    %58 = vector.broadcast %cst_43 : f32 to vector<8x256xf32>
    %59 = arith.maximumf %57, %58 : vector<8x256xf32>
    %cst_44 = arith.constant 0.000000e+00 : f32
    %60 = vector.broadcast %cst_44 : f32 to vector<8x290xf32>
    %c0_45 = arith.constant 0 : index
    %c0_46 = arith.constant 0 : index
    %61 = vector.load %arg10[%c0_45, %c0_46] : memref<8x290xf32, #tpu.memory_space<vmem>>, vector<8x290xf32>
    tpu.vector_store %arg10[%c0_45, %c0_46], %60 {strides = array<i32>} : memref<8x290xf32, #tpu.memory_space<vmem>>, vector<8x290xf32>,
    %c0_47 = arith.constant 0 : index
    %c17_48 = arith.constant 17 : index
    %62 = vector.load %arg10[%c0_47, %c17_48] : memref<8x290xf32, #tpu.memory_space<vmem>>, vector<8x256xf32>
    tpu.vector_store %arg10[%c0_47, %c17_48], %59 {strides = array<i32>} : memref<8x290xf32, #tpu.memory_space<vmem>>, vector<8x256xf32>,
    %c0_49 = arith.constant 0 : index
    %c0_50 = arith.constant 0 : index
    %63 = vector.load %arg10[%c0_49, %c0_50] : memref<8x290xf32, #tpu.memory_space<vmem>>, vector<8x256xf32>
    %cst_51 = arith.constant 0.000000e+00 : f32
    %64 = vector.shape_cast %2 : vector<1x256xi1> to vector<1x256xi1>
    %65 = vector.broadcast %64 : vector<1x256xi1> to vector<8x256xi1>
    %66 = vector.broadcast %cst_51 : f32 to vector<8x256xf32>
    %67 = arith.select %65, %63, %66 : vector<8x256xi1>, vector<8x256xf32>
    %c0_52 = arith.constant 0 : index
    %c0_53 = arith.constant 0 : index
    %68 = vector.load %arg11[%c0_52, %c0_53] : memref<72x256xf32, #tpu.memory_space<vmem>>, vector<8x256xf32>
    tpu.vector_store %arg11[%c0_52, %c0_53], %67 {strides = array<i32>} : memref<72x256xf32, #tpu.memory_space<vmem>>, vector<8x256xf32>,
    %c0_54 = arith.constant 0 : index
    %c1_55 = arith.constant 1 : index
    %69 = vector.load %arg10[%c0_54, %c1_55] : memref<8x290xf32, #tpu.memory_space<vmem>>, vector<8x256xf32>
    %c8_56 = arith.constant 8 : index
    %c0_57 = arith.constant 0 : index
    %70 = vector.load %arg11[%c8_56, %c0_57] : memref<72x256xf32, #tpu.memory_space<vmem>>, vector<8x256xf32>
    tpu.vector_store %arg11[%c8_56, %c0_57], %69 {strides = array<i32>} : memref<72x256xf32, #tpu.memory_space<vmem>>, vector<8x256xf32>,
    %c0_58 = arith.constant 0 : index
    %c2_59 = arith.constant 2 : index
    %71 = vector.load %arg10[%c0_58, %c2_59] : memref<8x290xf32, #tpu.memory_space<vmem>>, vector<8x256xf32>
    %cst_60 = arith.constant 0.000000e+00 : f32
    %72 = vector.shape_cast %4 : vector<1x256xi1> to vector<1x256xi1>
    %73 = vector.broadcast %72 : vector<1x256xi1> to vector<8x256xi1>
    %74 = vector.broadcast %cst_60 : f32 to vector<8x256xf32>
    %75 = arith.select %73, %71, %74 : vector<8x256xi1>, vector<8x256xf32>
    %c16_61 = arith.constant 16 : index
    %c0_62 = arith.constant 0 : index
    %76 = vector.load %arg11[%c16_61, %c0_62] : memref<72x256xf32, #tpu.memory_space<vmem>>, vector<8x256xf32>
    tpu.vector_store %arg11[%c16_61, %c0_62], %75 {strides = array<i32>} : memref<72x256xf32, #tpu.memory_space<vmem>>, vector<8x256xf32>,
    %c0_63 = arith.constant 0 : index
    %c16_64 = arith.constant 16 : index
    %77 = vector.load %arg10[%c0_63, %c16_64] : memref<8x290xf32, #tpu.memory_space<vmem>>, vector<8x256xf32>
    %cst_65 = arith.constant 0.000000e+00 : f32
    %78 = vector.shape_cast %2 : vector<1x256xi1> to vector<1x256xi1>
    %79 = vector.broadcast %78 : vector<1x256xi1> to vector<8x256xi1>
    %80 = vector.broadcast %cst_65 : f32 to vector<8x256xf32>
    %81 = arith.select %79, %77, %80 : vector<8x256xi1>, vector<8x256xf32>
    %c24_66 = arith.constant 24 : index
    %c0_67 = arith.constant 0 : index
    %82 = vector.load %arg11[%c24_66, %c0_67] : memref<72x256xf32, #tpu.memory_space<vmem>>, vector<8x256xf32>
    tpu.vector_store %arg11[%c24_66, %c0_67], %81 {strides = array<i32>} : memref<72x256xf32, #tpu.memory_space<vmem>>, vector<8x256xf32>,
    %c0_68 = arith.constant 0 : index
    %c17_69 = arith.constant 17 : index
    %83 = vector.load %arg10[%c0_68, %c17_69] : memref<8x290xf32, #tpu.memory_space<vmem>>, vector<8x256xf32>
    %c32_70 = arith.constant 32 : index
    %c0_71 = arith.constant 0 : index
    %84 = vector.load %arg11[%c32_70, %c0_71] : memref<72x256xf32, #tpu.memory_space<vmem>>, vector<8x256xf32>
    tpu.vector_store %arg11[%c32_70, %c0_71], %83 {strides = array<i32>} : memref<72x256xf32, #tpu.memory_space<vmem>>, vector<8x256xf32>,
    %c0_72 = arith.constant 0 : index
    %c18_73 = arith.constant 18 : index
    %85 = vector.load %arg10[%c0_72, %c18_73] : memref<8x290xf32, #tpu.memory_space<vmem>>, vector<8x256xf32>
    %cst_74 = arith.constant 0.000000e+00 : f32
    %86 = vector.shape_cast %4 : vector<1x256xi1> to vector<1x256xi1>
    %87 = vector.broadcast %86 : vector<1x256xi1> to vector<8x256xi1>
    %88 = vector.broadcast %cst_74 : f32 to vector<8x256xf32>
    %89 = arith.select %87, %85, %88 : vector<8x256xi1>, vector<8x256xf32>
    %c40 = arith.constant 40 : index
    %c0_75 = arith.constant 0 : index
    %90 = vector.load %arg11[%c40, %c0_75] : memref<72x256xf32, #tpu.memory_space<vmem>>, vector<8x256xf32>
    tpu.vector_store %arg11[%c40, %c0_75], %89 {strides = array<i32>} : memref<72x256xf32, #tpu.memory_space<vmem>>, vector<8x256xf32>,
    %c0_76 = arith.constant 0 : index
    %c32_77 = arith.constant 32 : index
    %91 = vector.load %arg10[%c0_76, %c32_77] : memref<8x290xf32, #tpu.memory_space<vmem>>, vector<8x256xf32>
    %cst_78 = arith.constant 0.000000e+00 : f32
    %92 = vector.shape_cast %2 : vector<1x256xi1> to vector<1x256xi1>
    %93 = vector.broadcast %92 : vector<1x256xi1> to vector<8x256xi1>
    %94 = vector.broadcast %cst_78 : f32 to vector<8x256xf32>
    %95 = arith.select %93, %91, %94 : vector<8x256xi1>, vector<8x256xf32>
    %c48 = arith.constant 48 : index
    %c0_79 = arith.constant 0 : index
    %96 = vector.load %arg11[%c48, %c0_79] : memref<72x256xf32, #tpu.memory_space<vmem>>, vector<8x256xf32>
    tpu.vector_store %arg11[%c48, %c0_79], %95 {strides = array<i32>} : memref<72x256xf32, #tpu.memory_space<vmem>>, vector<8x256xf32>,
    %c0_80 = arith.constant 0 : index
    %c33_81 = arith.constant 33 : index
    %97 = vector.load %arg10[%c0_80, %c33_81] : memref<8x290xf32, #tpu.memory_space<vmem>>, vector<8x256xf32>
    %c56 = arith.constant 56 : index
    %c0_82 = arith.constant 0 : index
    %98 = vector.load %arg11[%c56, %c0_82] : memref<72x256xf32, #tpu.memory_space<vmem>>, vector<8x256xf32>
    tpu.vector_store %arg11[%c56, %c0_82], %97 {strides = array<i32>} : memref<72x256xf32, #tpu.memory_space<vmem>>, vector<8x256xf32>,
    %c0_83 = arith.constant 0 : index
    %c34_84 = arith.constant 34 : index
    %99 = vector.load %arg10[%c0_83, %c34_84] : memref<8x290xf32, #tpu.memory_space<vmem>>, vector<8x256xf32>
    %cst_85 = arith.constant 0.000000e+00 : f32
    %100 = vector.shape_cast %4 : vector<1x256xi1> to vector<1x256xi1>
    %101 = vector.broadcast %100 : vector<1x256xi1> to vector<8x256xi1>
    %102 = vector.broadcast %cst_85 : f32 to vector<8x256xf32>
    %103 = arith.select %101, %99, %102 : vector<8x256xi1>, vector<8x256xf32>
    %c64 = arith.constant 64 : index
    %c0_86 = arith.constant 0 : index
    %104 = vector.load %arg11[%c64, %c0_86] : memref<72x256xf32, #tpu.memory_space<vmem>>, vector<8x256xf32>
    tpu.vector_store %arg11[%c64, %c0_86], %103 {strides = array<i32>} : memref<72x256xf32, #tpu.memory_space<vmem>>, vector<8x256xf32>,
    %c0_87 = arith.constant 0 : index
    %c0_88 = arith.constant 0 : index
    %105 = vector.load %arg5[%c0_87, %c0_88] : memref<8x72xf32, #tpu.memory_space<vmem>>, vector<8x72xf32>
    %c0_89 = arith.constant 0 : index
    %c0_90 = arith.constant 0 : index
    %106 = vector.load %arg11[%c0_89, %c0_90] : memref<72x256xf32, #tpu.memory_space<vmem>>, vector<72x256xf32>
    %cst_91 = arith.constant dense<0.000000e+00> : vector<8x256xf32>
    %107 = tpu.matmul %105, %106, %cst_91 {dimension_numbers = #tpu.dot_dimension_numbers<[1], [0], [0], [1], [0, 0, 1, 1], [], []>} : vector<8x72xf32>, vector<72x256xf32>, vector<8x256xf32> -> vector<8x256xf32>
    %c0_92 = arith.constant 0 : index
    %c0_93 = arith.constant 0 : index
    %108 = vector.load %arg6[%c0_92, %c0_93] : memref<8x1xf32, #tpu.memory_space<vmem>>, vector<8x1xf32>
    %109 = vector.broadcast %108 : vector<8x1xf32> to vector<8x256xf32>
    %110 = arith.addf %107, %109 : vector<8x256xf32>
    %cst_94 = arith.constant 0.000000e+00 : f32
    %111 = vector.broadcast %cst_94 : f32 to vector<8x256xf32>
    %112 = arith.maximumf %110, %111 : vector<8x256xf32>
    %c0_95 = arith.constant 0 : index
    %c0_96 = arith.constant 0 : index
    %c0_97 = arith.constant 0 : index
    %113 = vector.load %arg7[%c0_95, %c0_96, %c0_97] : memref<1x8x256xf32, #tpu.memory_space<vmem>>, vector<1x8x256xf32>
    %114 = vector.shape_cast %113 : vector<1x8x256xf32> to vector<8x256xf32>
    %115 = vector.shape_cast %112 : vector<8x256xf32> to vector<1x8x256xf32>
    tpu.vector_store %arg7[%c0_95, %c0_96, %c0_97], %115 {strides = array<i32>} : memref<1x8x256xf32, #tpu.memory_space<vmem>>, vector<1x8x256xf32>,
    return
  }
  func.func @transform_0(%arg0: i32) -> (i32, i32, i32) {
    %c0_i32 = arith.constant 0 : i32
    %c0_i32_0 = arith.constant 0 : i32
    %c0_i32_1 = arith.constant 0 : i32
    return %arg0, %c0_i32, %c0_i32_0 : i32, i32, i32
  }
  func.func @transform_1(%arg0: i32) -> (i32, i32) {
    %c0_i32 = arith.constant 0 : i32
    %c0_i32_0 = arith.constant 0 : i32
    %c0_i32_1 = arith.constant 0 : i32
    return %c0_i32, %c0_i32_0 : i32, i32
  }
  func.func @transform_2(%arg0: i32) -> (i32, i32) {
    %c0_i32 = arith.constant 0 : i32
    %c0_i32_0 = arith.constant 0 : i32
    %c0_i32_1 = arith.constant 0 : i32
    return %c0_i32, %c0_i32_0 : i32, i32
  }
  func.func @transform_3(%arg0: i32) -> (i32, i32) {
    %c0_i32 = arith.constant 0 : i32
    %c0_i32_0 = arith.constant 0 : i32
    %c0_i32_1 = arith.constant 0 : i32
    return %c0_i32, %c0_i32_0 : i32, i32
  }
  func.func @transform_4(%arg0: i32) -> (i32, i32) {
    %c0_i32 = arith.constant 0 : i32
    %c0_i32_0 = arith.constant 0 : i32
    %c0_i32_1 = arith.constant 0 : i32
    return %c0_i32, %c0_i32_0 : i32, i32
  }
  func.func @transform_5(%arg0: i32) -> (i32, i32) {
    %c0_i32 = arith.constant 0 : i32
    %c0_i32_0 = arith.constant 0 : i32
    %c0_i32_1 = arith.constant 0 : i32
    return %c0_i32, %c0_i32_0 : i32, i32
  }
  func.func @transform_6(%arg0: i32) -> (i32, i32, i32) {
    %c0_i32 = arith.constant 0 : i32
    %c0_i32_0 = arith.constant 0 : i32
    %c0_i32_1 = arith.constant 0 : i32
    return %arg0, %c0_i32, %c0_i32_0 : i32, i32, i32
  }
}

</mosaic_0001>

<llo_original>
// kernel: tpu_custom_call.1
$region0: #{tpu_custom_call.1}
  #allocation0 [shape = 'u32[]', space=smem, size = 0x4, offset = 0x4, fixed_abs, tag = 'smem constant byte address 0x4 - core index']
  #allocation1 [shape = 'u32[144,128]{1,0:T(1,128)}', space=vmem, size = 0x12000, scoped, tag = 'internal scratch']
  #allocation2 [shape = 'f32[4,290]{1,0:T(4,128)}', space=vmem, size = 0x1800, scoped, tag = 'scratch operand']
  #allocation3 [shape = 'f32[36,256]{1,0:T(8,128)}', space=vmem, size = 0xa000, scoped, tag = 'scratch operand']
  #allocation4 [shape = 'f32[8,290]{1,0:T(8,128)}', space=vmem, size = 0x3000, scoped, tag = 'scratch operand']
  #allocation5 [shape = 'f32[72,256]{1,0:T(8,128)}', space=vmem, size = 0x12000, scoped, tag = 'scratch operand']
  %s0 = inlined_call_operand.vmem [shape: f32[2,4,256], index: 0, kind: input, shape index: {}]
  %s1 = inlined_call_operand.hbm [shape: s32[1,256], index: 1, kind: input, shape index: {}]
  %s2 = inlined_call_operand.vmem [shape: f32[8,36], index: 2, kind: input, shape index: {}]
  %s3 = inlined_call_operand.vmem [shape: f32[8,1], index: 3, kind: input, shape index: {}]
  %s4 = inlined_call_operand.vmem [shape: f32[8,72], index: 4, kind: input, shape index: {}]
  %s5 = inlined_call_operand.vmem [shape: f32[8,1], index: 5, kind: input, shape index: {}]
  %s6 = inlined_call_operand.hbm [shape: f32[2,8,256], index: 6, kind: output, shape index: {}]
  %s7 = sld [smem:[#allocation0]]
  $region61: #{tpu_custom_call.1} parent=0
    _
  %s9 = ssub.s32 1, %s7
  %s10 = scalar_select 0, %s9, %s7
  $region1: #{tpu_custom_call.1} parent=0
    #allocation6 [shape = 'u8[1024]{0}', space=vmem, size = 0x400, scoped, tag = 'input window, operand 1, single buffered']
    #allocation7 [shape = 's32[2]{0}', space=sflag, size = 0x8, scoped, tag = 'scoped memory for tpu_custom_call.1']
    #allocation8 [shape = 's32[2]{0}', space=sflag, size = 0x8, scoped, tag = 'scoped memory for tpu_custom_call.1']
    #allocation9 [shape = 'u8[16384]{0}', space=vmem, size = 0x4000, scoped, tag = 'output window, operand 0']
    %11 = vsyncpa [#allocation7], 0
    %12 = vsyncpa [#allocation8], 0
    %s13 = scalar_lea.sflag [#allocation8], 1
    %14 = vsyncpa %s13, 0
    loop: start=0, step=1, limit=4
    $region2: #{tpu_custom_call.1} parent=1 // loop_pre_header
      _
    $region3: #{tpu_custom_call.1} parent=1 // loop_header
      %s16 = sphi 0, %s20
      %p17 = scmp.ge.s32.totalorder %s16, 4
      %s26 = sphi 0, %s28
      %s29 = sphi 0, %s26
      %s30 = sphi 0, %s29
      %s46 = sphi 0, %s30
      %s50 = sphi 0, %s50
      %s52 = sphi 0, %s50
      %s53 = sphi 0, %s52
      %s67 = sphi 0, %s53
      %s71 = sphi 0, %s71
      %s73 = sphi 0, %s71
      %s74 = sphi 0, %s73
      %s88 = sphi 0, %s74
      %s92 = sphi 0, %s92
      %s94 = sphi 0, %s92
      %s95 = sphi 0, %s94
      %s109 = sphi 0, %s95
      %s113 = sphi 0, %s113
      %s115 = sphi 0, %s113
      %s116 = sphi 0, %s115
      %s130 = sphi 0, %s116
      %s134 = sphi 0, %s134
      %s136 = sphi 0, %s134
      %s137 = sphi 0, %s136
      %s151 = sphi 0, %s137
      %s157 = sphi 0, %s159
      %s160 = sphi 0, %s157
      %s161 = sphi 0, %s160
      %s177 = sphi 0, %s161
    $region4: #{tpu_custom_call.1} parent=1 // loop_header_branch
      %19 = sbr.rel (%p17) target = $region8
    $region5: #{tpu_custom_call.1} parent=1 // loop_body
      %s21 = ssub.s32 %s16, 1
      %s22 = ssub.s32 %s16, 2
      %s23 = sadd.s32 %s16, 1
      %s24 = ssub.s32 %s16, %s23
      %p25 = scmp.eq.s32.totalorder %s24, 0
      %s27 = sadd.s32 %s26, 1
      %s28 = scalar_select %p25, %s26, %s27
      %p31 = pneg %p25
      %p32 = scmp.eq.s32.totalorder %s16, 1
      %p33 = por %p31, %p32
      %p34 = scmp.ne.s32.totalorder %s26, %s29
      %p35 = scmp.eq.s32.totalorder %s16, 0
      %p36 = por %p34, %p35
      %p37 = scmp.ne.s32.totalorder %s26, %s29
      %p38 = scmp.eq.s32.totalorder %s21, 1
      %p39 = por %p37, %p38
      %p40 = scmp.ne.s32.totalorder %s29, %s30
      %p41 = scmp.eq.s32.totalorder %s21, 0
      %p42 = por %p40, %p41
      %p43 = scmp.ne.s32.totalorder %s29, %s30
      %p44 = scmp.eq.s32.totalorder %s22, 1
      %p45 = por %p43, %p44
      %p47 = scmp.ne.s32.totalorder %s30, %s46
      %p48 = scmp.eq.s32.totalorder %s22, 0
      %p49 = por %p47, %p48
      %s51 = sadd.s32 %s50, 1
      %p54 = scmp.eq.s32.totalorder %s16, 1
      %p55 = scmp.ne.s32.totalorder %s50, %s52
      %p56 = scmp.eq.s32.totalorder %s16, 0
      %p57 = por %p55, %p56
      %p58 = scmp.ne.s32.totalorder %s50, %s52
      %p59 = scmp.eq.s32.totalorder %s21, 1
      %p60 = por %p58, %p59
      %p61 = scmp.ne.s32.totalorder %s52, %s53
      %p62 = scmp.eq.s32.totalorder %s21, 0
      %p63 = por %p61, %p62
      %p64 = scmp.ne.s32.totalorder %s52, %s53
      %p65 = scmp.eq.s32.totalorder %s22, 1
      %p66 = por %p64, %p65
      %p68 = scmp.ne.s32.totalorder %s53, %s67
      %p69 = scmp.eq.s32.totalorder %s22, 0
      %p70 = por %p68, %p69
      %s72 = sadd.s32 %s71, 1
      %p75 = scmp.eq.s32.totalorder %s16, 1
      %p76 = scmp.ne.s32.totalorder %s71, %s73
      %p77 = scmp.eq.s32.totalorder %s16, 0
      %p78 = por %p76, %p77
      %p79 = scmp.ne.s32.totalorder %s71, %s73
      %p80 = scmp.eq.s32.totalorder %s21, 1
      %p81 = por %p79, %p80
      %p82 = scmp.ne.s32.totalorder %s73, %s74
      %p83 = scmp.eq.s32.totalorder %s21, 0
      %p84 = por %p82, %p83
      %p85 = scmp.ne.s32.totalorder %s73, %s74
      %p86 = scmp.eq.s32.totalorder %s22, 1
      %p87 = por %p85, %p86
      %p89 = scmp.ne.s32.totalorder %s74, %s88
      %p90 = scmp.eq.s32.totalorder %s22, 0
      %p91 = por %p89, %p90
      %s93 = sadd.s32 %s92, 1
      %p96 = scmp.eq.s32.totalorder %s16, 1
      %p97 = scmp.ne.s32.totalorder %s92, %s94
      %p98 = scmp.eq.s32.totalorder %s16, 0
      %p99 = por %p97, %p98
      %p100 = scmp.ne.s32.totalorder %s92, %s94
      %p101 = scmp.eq.s32.totalorder %s21, 1
      %p102 = por %p100, %p101
      %p103 = scmp.ne.s32.totalorder %s94, %s95
      %p104 = scmp.eq.s32.totalorder %s21, 0
      %p105 = por %p103, %p104
      %p106 = scmp.ne.s32.totalorder %s94, %s95
      %p107 = scmp.eq.s32.totalorder %s22, 1
      %p108 = por %p106, %p107
      %p110 = scmp.ne.s32.totalorder %s95, %s109
      %p111 = scmp.eq.s32.totalorder %s22, 0
      %p112 = por %p110, %p111
      %s114 = sadd.s32 %s113, 1
      %p117 = scmp.eq.s32.totalorder %s16, 1
      %p118 = scmp.ne.s32.totalorder %s113, %s115
      %p119 = scmp.eq.s32.totalorder %s16, 0
      %p120 = por %p118, %p119
      %p121 = scmp.ne.s32.totalorder %s113, %s115
      %p122 = scmp.eq.s32.totalorder %s21, 1
      %p123 = por %p121, %p122
      %p124 = scmp.ne.s32.totalorder %s115, %s116
      %p125 = scmp.eq.s32.totalorder %s21, 0
      %p126 = por %p124, %p125
      %p127 = scmp.ne.s32.totalorder %s115, %s116
      %p128 = scmp.eq.s32.totalorder %s22, 1
      %p129 = por %p127, %p128
      %p131 = scmp.ne.s32.totalorder %s116, %s130
      %p132 = scmp.eq.s32.totalorder %s22, 0
      %p133 = por %p131, %p132
      %s135 = sadd.s32 %s134, 1
      %p138 = scmp.eq.s32.totalorder %s16, 1
      %p139 = scmp.ne.s32.totalorder %s134, %s136
      %p140 = scmp.eq.s32.totalorder %s16, 0
      %p141 = por %p139, %p140
      %p142 = scmp.ne.s32.totalorder %s134, %s136
      %p143 = scmp.eq.s32.totalorder %s21, 1
      %p144 = por %p142, %p143
      %p145 = scmp.ne.s32.totalorder %s136, %s137
      %p146 = scmp.eq.s32.totalorder %s21, 0
      %p147 = por %p145, %p146
      %p148 = scmp.ne.s32.totalorder %s136, %s137
      %p149 = scmp.eq.s32.totalorder %s22, 1
      %p150 = por %p148, %p149
      %p152 = scmp.ne.s32.totalorder %s137, %s151
      %p153 = scmp.eq.s32.totalorder %s22, 0
      %p154 = por %p152, %p153
      %s155 = ssub.s32 %s16, %s23
      %p156 = scmp.eq.s32.totalorder %s155, 0
      %s158 = sadd.s32 %s157, 1
      %s159 = scalar_select %p156, %s157, %s158
      %p162 = pneg %p156
      %p163 = scmp.eq.s32.totalorder %s16, 1
      %p164 = por %p162, %p163
      %p165 = scmp.ne.s32.totalorder %s157, %s160
      %p166 = scmp.eq.s32.totalorder %s16, 0
      %p167 = por %p165, %p166
      %p168 = scmp.ne.s32.totalorder %s157, %s160
      %p169 = scmp.eq.s32.totalorder %s21, 1
      %p170 = por %p168, %p169
      %p171 = scmp.ne.s32.totalorder %s160, %s161
      %p172 = scmp.eq.s32.totalorder %s21, 0
      %p173 = por %p171, %p172
      %p174 = scmp.ne.s32.totalorder %s160, %s161
      %p175 = scmp.eq.s32.totalorder %s22, 1
      %p176 = por %p174, %p175
      %p178 = scmp.ne.s32.totalorder %s161, %s177
      %p179 = scmp.eq.s32.totalorder %s22, 0
      %p180 = por %p178, %p179
      %p181 = scmp.le.s32.totalorder 1, %s16
      %p182 = scmp.lt.s32.totalorder %s16, 3
      %p183 = pnand %p181, %p182
      %p184 = pneg %p183
      // Predicated region
      $region9: #{tpu_custom_call.1} parent=5 // pred_check
        _
      $region10: #{tpu_custom_call.1} parent=5 // pred_check_branch
        %186 = sbr.rel (%p183) target = $region12
      $region11: #{tpu_custom_call.1} parent=5 // pred_region
        %s187 = ssub.s32 %s16, 1
        // Predicated region
        $region13: #{tpu_custom_call.1} parent=11 // pred_check
          %p188 = pneg %p63
        $region14: #{tpu_custom_call.1} parent=11 // pred_check_branch
          %190 = sbr.rel (%p188) target = $region16
        $region15: #{tpu_custom_call.1} parent=11 // pred_region
          %s192 = ssub.s32 32, 32
          %193 = vsyncadd [#allocation7], %s192
          %s195 = sshll.u32 [#allocation6], 4
          %s196 = int_to_ptr.vmem [resolvable:$true] %s195
          %198 = dma.hbm_to_vmem [thread:$0]  %s1, 32, %s196, [#allocation7]
        $region16: #{tpu_custom_call.1} parent=11 // pred_fallthru
          _
        // Predicated region
        $region17: #{tpu_custom_call.1} parent=11 // pred_check
          %p199 = pneg %p84
        $region18: #{tpu_custom_call.1} parent=11 // pred_check_branch
          %201 = sbr.rel (%p199) target = $region20
        $region19: #{tpu_custom_call.1} parent=11 // pred_region
          _
        $region20: #{tpu_custom_call.1} parent=11 // pred_fallthru
          _
        // Predicated region
        $region21: #{tpu_custom_call.1} parent=11 // pred_check
          %p202 = pneg %p105
        $region22: #{tpu_custom_call.1} parent=11 // pred_check_branch
          %204 = sbr.rel (%p202) target = $region24
        $region23: #{tpu_custom_call.1} parent=11 // pred_region
          _
        $region24: #{tpu_custom_call.1} parent=11 // pred_fallthru
          _
        // Predicated region
        $region25: #{tpu_custom_call.1} parent=11 // pred_check
          %p205 = pneg %p126
        $region26: #{tpu_custom_call.1} parent=11 // pred_check_branch
          %207 = sbr.rel (%p205) target = $region28
        $region27: #{tpu_custom_call.1} parent=11 // pred_region
          _
        $region28: #{tpu_custom_call.1} parent=11 // pred_fallthru
          _
        // Predicated region
        $region29: #{tpu_custom_call.1} parent=11 // pred_check
          %p208 = pneg %p147
        $region30: #{tpu_custom_call.1} parent=11 // pred_check_branch
          %210 = sbr.rel (%p208) target = $region32
        $region31: #{tpu_custom_call.1} parent=11 // pred_region
          _
        $region32: #{tpu_custom_call.1} parent=11 // pred_fallthru
          _
      $region12: #{tpu_custom_call.1} parent=5 // pred_fallthru
        _
      %p211 = scmp.lt.s32.totalorder %s16, 2
      // Predicated region
      $region33: #{tpu_custom_call.1} parent=5 // pred_check
        %p212 = pneg %p211
      $region34: #{tpu_custom_call.1} parent=5 // pred_check_branch
        %214 = sbr.rel (%p212) target = $region36
      $region35: #{tpu_custom_call.1} parent=5 // pred_region
        // Predicated region
        $region37: #{tpu_custom_call.1} parent=35 // pred_check
          %p215 = pneg %p36
        $region38: #{tpu_custom_call.1} parent=35 // pred_check_branch
          %217 = sbr.rel (%p215) target = $region40
        $region39: #{tpu_custom_call.1} parent=35 // pred_region
          %p218 = scmp.lt.s32.totalorder %s16, 1
          %s219 = scalar_select %p218, %s16, 1
          %s220 = smul.addr %s219, 2
          %s221 = smul.addr %s220, 4
          %s222 = scalar_lea.vmem %s0, %s221
        $region40: #{tpu_custom_call.1} parent=35 // pred_fallthru
          _
      $region36: #{tpu_custom_call.1} parent=5 // pred_fallthru
        _
      %p223 = scmp.le.s32.totalorder 1, %s16
      %p224 = scmp.lt.s32.totalorder %s16, 3
      %p225 = pnand %p223, %p224
      %p226 = pneg %p225
      // Predicated region
      $region41: #{tpu_custom_call.1} parent=5 // pred_check
        _
      $region42: #{tpu_custom_call.1} parent=5 // pred_check_branch
        %228 = sbr.rel (%p225) target = $region44
      $region43: #{tpu_custom_call.1} parent=5 // pred_region
        %s229 = ssub.s32 %s16, 1
        // Predicated region
        $region45: #{tpu_custom_call.1} parent=43 // pred_check
          %p230 = pneg %p63
        $region46: #{tpu_custom_call.1} parent=43 // pred_check_branch
          %232 = sbr.rel (%p230) target = $region48
        $region47: #{tpu_custom_call.1} parent=43 // pred_region
          %233 = dma.done [#allocation7], 32
        $region48: #{tpu_custom_call.1} parent=43 // pred_fallthru
          _
        %p234 = scmp.lt.s32.totalorder %s21, 1
        %s235 = scalar_select %p234, %s21, 1
        %s236 = smul.addr %s235, 2
        %s237 = smul.addr %s236, 4
        %s238 = scalar_lea.vmem %s0, %s237
        %p239 = pneg %p42
        %p240 = pneg %p39
        %p241 = pneg %p63
        %p242 = pneg %p60
        %p243 = pneg %p84
        %p244 = pneg %p81
        %p245 = pneg %p105
        %p246 = pneg %p102
        %p247 = pneg %p126
        %p248 = pneg %p123
        %p249 = pneg %p147
        %p250 = pneg %p144
        %p251 = pneg %p173
        %p252 = pneg %p170
        %s253 = sand.u32 %s160, 1
        %s254 = scalar_lea.sflag [#allocation8], %s253
        %s255 = sand.u32 %s160, 1
        %s256 = smul.addr %s255, 16
        %s257 = scalar_lea.vmem [#allocation9], %s256
        %p258 = scmp.lt.s32.totalorder %s21, 1
        %s259 = scalar_select %p258, %s21, 1
        %s260 = smul.addr %s259, 2
        %s261 = smul.addr %s260, 4
        %s262 = scalar_lea.vmem %s0, %s261
        %v263 = vld [vmem:[#allocation6] sm:$0x3]
        %vm264 = vcmp.ge.s32.totalorder %v263, 1
        %vm265 = vcmp.le.s32.totalorder %v263, 14
        %266 = vst [vmem:[#allocation2] sm:$0xff] 0.0
        %vm267 = vcmask 273408
        %268 = vst.msk [vmem:[#allocation2 + $0x8] sm:$0xf] %vm267, 0.0
        %v269 = vld [vmem:[%s262] sm:$0xff]
        %271 = vrot.lane.b32.xlu0 %v269, 17
        %v272 = vpop.permute.xlu0 %271
        %v273 = vrot.slane %v272, 4
        %vm274 = vcmask 138240
        %v275 = vsel %vm274, %v273, %v272
        %vm278 = vcmask 1043592
        %vm279 = vcmask 1047556
        %vm280 = vmor %vm279, %vm278
        %281 = vst.msk [vmem:[#allocation2] sm:$0xff] %vm280, %v275
        %vm282 = vcmask 134144
        %283 = vst.msk [vmem:[#allocation2 + $0x8] sm:$0xf] %vm282, %v273
        %v284 = vld [vmem:[#allocation2] sm:$0xff]
        %v285 = vsel %vm264, 1, 0
        %v286 = vlaneseq
        %v287 = vshrl.u32 %v286, 7
        %v288 = vsub.s32 0, %v287
        %v289 = vrot.slane %v285, %v288
        %v290 = vlaneseq
        %v291 = vshrl.u32 %v290, 7
        %v292 = vsub.s32 1, %v291
        %v293 = vrot.slane %v285, %v292
        %vm294 = vcmp.eq.s32.totalorder %v289, 1
        %vm295 = vcmp.eq.s32.totalorder %v293, 1
        %v297 = vcombine.high %v284, %v284
        %v299 = vsel %vm294, %v284, 0.0
        %v300 = vsel %vm295, %v297, 0.0
        %301 = vst [vmem:[#allocation3] sm:$0xf] %v299
        %302 = vst [vmem:[#allocation3 + $0x8] sm:$0xf] %v300
        %v303 = vld [vmem:[#allocation2] sm:$0xff]
        %v304 = vld [vmem:[#allocation2 + $0x8] sm:$0xf]
        %v307 = vcombine.low %v303, %v303
        %v308 = vcombine.low %v304, %v304
        %309 = vrot.lane.b32.xlu0 %v307, 127
        %v310 = vpop.permute.xlu0 %309
        %311 = vrot.lane.b32.xlu0 %v303, 127
        %v312 = vpop.permute.xlu0 %311
        %313 = vrot.lane.b32.xlu0 %v308, 127
        %v314 = vpop.permute.xlu0 %313
        %vm315 = vcmask 1039360
        %v316 = vsel %vm315, %v310, %v312
        %v317 = vsel %vm315, %v312, %v314
        %320 = vst [vmem:[#allocation3] sm:$0xf0] %v316
        %321 = vst [vmem:[#allocation3 + $0x8] sm:$0xf0] %v317
        %v322 = vld [vmem:[#allocation2] sm:$0xff]
        %v323 = vld [vmem:[#allocation2 + $0x8] sm:$0xf]
        %v324 = vsel %vm265, 1, 0
        %v325 = vlaneseq
        %v326 = vshrl.u32 %v325, 7
        %v327 = vsub.s32 0, %v326
        %v328 = vrot.slane %v324, %v327
        %v329 = vlaneseq
        %v330 = vshrl.u32 %v329, 7
        %v331 = vsub.s32 1, %v330
        %v332 = vrot.slane %v324, %v331
        %vm333 = vcmp.eq.s32.totalorder %v328, 1
        %vm334 = vcmp.eq.s32.totalorder %v332, 1
        %v337 = vcombine.high %v322, %v322
        %338 = vrot.lane.b32.xlu0 %v322, 126
        %v339 = vpop.permute.xlu0 %338
        %340 = vrot.lane.b32.xlu0 %v337, 126
        %v341 = vpop.permute.xlu0 %340
        %342 = vrot.lane.b32.xlu0 %v323, 126
        %v343 = vpop.permute.xlu0 %342
        %vm344 = vcmask 1031168
        %v345 = vsel %vm344, %v339, %v341
        %v346 = vsel %vm344, %v341, %v343
        %v349 = vsel %vm333, %v345, 0.0
        %v350 = vsel %vm334, %v346, 0.0
        %351 = vst [vmem:[#allocation3 + $0x10] sm:$0xf] %v349
        %352 = vst [vmem:[#allocation3 + $0x18] sm:$0xf] %v350
        %v353 = vld [vmem:[#allocation2] sm:$0xff]
        %v354 = vld [vmem:[#allocation2 + $0x8] sm:$0xf]
        %v357 = vcombine.high %v353, %v353
        %358 = vrot.lane.b32.xlu0 %v353, 112
        %v359 = vpop.permute.xlu0 %358
        %360 = vrot.lane.b32.xlu0 %v357, 112
        %v361 = vpop.permute.xlu0 %360
        %362 = vrot.lane.b32.xlu0 %v354, 112
        %v363 = vpop.permute.xlu0 %362
        %vm364 = vcmask 916480
        %v365 = vsel %vm364, %v359, %v361
        %v366 = vsel %vm364, %v361, %v363
        %v369 = vsel %vm294, %v365, 0.0
        %v370 = vsel %vm295, %v366, 0.0
        %v373 = vrot.slane %v369, 4
        %v374 = vrot.slane %v370, 4
        %377 = vst [vmem:[#allocation3 + $0x10] sm:$0xf0] %v373
        %378 = vst [vmem:[#allocation3 + $0x18] sm:$0xf0] %v374
        %v379 = vld [vmem:[#allocation2] sm:$0xff]
        %v380 = vld [vmem:[#allocation2 + $0x8] sm:$0xf]
        %v383 = vcombine.high %v379, %v379
        %384 = vrot.lane.b32.xlu0 %v379, 111
        %v385 = vpop.permute.xlu0 %384
        %386 = vrot.lane.b32.xlu0 %v383, 111
        %v387 = vpop.permute.xlu0 %386
        %388 = vrot.lane.b32.xlu0 %v380, 111
        %v389 = vpop.permute.xlu0 %388
        %vm390 = vcmask 908288
        %v391 = vsel %vm390, %v385, %v387
        %v392 = vsel %vm390, %v387, %v389
        %395 = vst [vmem:[#allocation3 + $0x20] sm:$0xf] %v391
        %396 = vst [vmem:[#allocation3 + $0x28] sm:$0xf] %v392
        %v397 = vld [vmem:[#allocation2] sm:$0xff]
        %v398 = vld [vmem:[#allocation2 + $0x8] sm:$0xf]
        %v401 = vcombine.high %v397, %v397
        %402 = vrot.lane.b32.xlu0 %v397, 110
        %v403 = vpop.permute.xlu0 %402
        %404 = vrot.lane.b32.xlu0 %v401, 110
        %v405 = vpop.permute.xlu0 %404
        %406 = vrot.lane.b32.xlu0 %v398, 110
        %v407 = vpop.permute.xlu0 %406
        %vm408 = vcmask 900096
        %v409 = vsel %vm408, %v403, %v405
        %v410 = vsel %vm408, %v405, %v407
        %v413 = vsel %vm333, %v409, 0.0
        %v414 = vsel %vm334, %v410, 0.0
        %v417 = vrot.slane %v413, 4
        %v418 = vrot.slane %v414, 4
        %421 = vst [vmem:[#allocation3 + $0x20] sm:$0xf0] %v417
        %422 = vst [vmem:[#allocation3 + $0x28] sm:$0xf0] %v418
        %v423 = vld [vmem:[#allocation2] sm:$0xff]
        %v424 = vld [vmem:[#allocation2 + $0x8] sm:$0xf]
        %v427 = vcombine.high %v423, %v423
        %428 = vrot.lane.b32.xlu0 %v423, 96
        %v429 = vpop.permute.xlu0 %428
        %430 = vrot.lane.b32.xlu0 %v427, 96
        %v431 = vpop.permute.xlu0 %430
        %432 = vrot.lane.b32.xlu0 %v424, 96
        %v433 = vpop.permute.xlu0 %432
        %vm434 = vcmask 785408
        %v435 = vsel %vm434, %v429, %v431
        %v436 = vsel %vm434, %v431, %v433
        %v439 = vsel %vm294, %v435, 0.0
        %v440 = vsel %vm295, %v436, 0.0
        %441 = vst [vmem:[#allocation3 + $0x30] sm:$0xf] %v439
        %442 = vst [vmem:[#allocation3 + $0x38] sm:$0xf] %v440
        %v443 = vld [vmem:[#allocation2] sm:$0xff]
        %v444 = vld [vmem:[#allocation2 + $0x8] sm:$0xf]
        %v447 = vcombine.low %v443, %v443
        %v448 = vcombine.low %v444, %v444
        %449 = vrot.lane.b32.xlu0 %v447, 95
        %v450 = vpop.permute.xlu0 %449
        %451 = vrot.lane.b32.xlu0 %v443, 95
        %v452 = vpop.permute.xlu0 %451
        %453 = vrot.lane.b32.xlu0 %v448, 95
        %v454 = vpop.permute.xlu0 %453
        %vm455 = vcmask 777216
        %v456 = vsel %vm455, %v450, %v452
        %v457 = vsel %vm455, %v452, %v454
        %460 = vst [vmem:[#allocation3 + $0x30] sm:$0xf0] %v456
        %461 = vst [vmem:[#allocation3 + $0x38] sm:$0xf0] %v457
        %v462 = vld [vmem:[#allocation2] sm:$0xff]
        %v463 = vld [vmem:[#allocation2 + $0x8] sm:$0xf]
        %v466 = vcombine.high %v462, %v462
        %467 = vrot.lane.b32.xlu0 %v462, 94
        %v468 = vpop.permute.xlu0 %467
        %469 = vrot.lane.b32.xlu0 %v466, 94
        %v470 = vpop.permute.xlu0 %469
        %471 = vrot.lane.b32.xlu0 %v463, 94
        %v472 = vpop.permute.xlu0 %471
        %vm473 = vcmask 769024
        %v474 = vsel %vm473, %v468, %v470
        %v475 = vsel %vm473, %v470, %v472
        %v478 = vsel %vm333, %v474, 0.0
        %v479 = vsel %vm334, %v475, 0.0
        %480 = vst [vmem:[#allocation3 + $0x40] sm:$0xf] %v478
        %481 = vst [vmem:[#allocation3 + $0x48] sm:$0xf] %v479
        %v482 = vld [vmem:[%s2] sm:$0xff]
        %v483 = vld [vmem:[#allocation3] sm:$0xff]
        %v484 = vld [vmem:[#allocation3 + $0x8] sm:$0xff]
        %v485 = vld [vmem:[#allocation3 + $0x10] sm:$0xff]
        %v486 = vld [vmem:[#allocation3 + $0x18] sm:$0xff]
        %v487 = vld [vmem:[#allocation3 + $0x20] sm:$0xff]
        %v488 = vld [vmem:[#allocation3 + $0x28] sm:$0xff]
        %v489 = vld [vmem:[#allocation3 + $0x30] sm:$0xff]
        %v490 = vld [vmem:[#allocation3 + $0x38] sm:$0xff]
        %v491 = vld [vmem:[#allocation3 + $0x40] sm:$0xf]
        %v492 = vld [vmem:[#allocation3 + $0x48] sm:$0xf]
        %v493 = vld [vmem:[%s3] sm:$0xff]
        %495 = vset.pattern.permute.xlu0 0
        %496 = vperm.xlu0 %495, %v493
        %v497 = vpop.permute.xlu0 %496
        %vm499 = vcmask 293888
        %v501 = vsel %vm499, %v482, 0
        %vm503 = vcmask 1043456
        %v505 = vsel %vm503, %v491, 0
        %v508 = vsel %vm503, %v492, 0
        %510 = vmatprep.subr.mxu0 %v484
        %511 = vmatpush1.msra.mxu0 %v483
        %512 = vmatprep.subr.mxu0 %v486
        %513 = vmatpush1.msra.mxu0 %v485
        %514 = vmatprep.subr.mxu0 %v488
        %515 = vmatpush1.msra.mxu0 %v487
        %516 = vmatprep.subr.mxu0 %v490
        %517 = vmatpush1.msra.mxu0 %v489
        %518 = vmatprep.subr.mxu0 %v508
        %519 = vmatpush1.msra.mxu0 %v505
        %520 = vmatprep.subr.mxu0 0.0
        %521 = vmatpush1.msra.mxu0 0.0
        %522 = vmatprep.subr.mxu0 0.0
        %523 = vmatpush1.msra.mxu0 0.0
        %524 = vmatprep.subr.mxu0 0.0
        %525 = vmatpush1.msra.mxu0 0.0
        %526 = vmatprep.subr.mxu0 0.0
        %527 = vmatpush1.msra.mxu0 0.0
        %528 = vmatprep.subr.mxu0 0.0
        %529 = vmatpush1.msra.mxu0 0.0
        %530 = vmatprep.subr.mxu0 0.0
        %531 = vmatpush1.msra.mxu0 0.0
        %532 = vmatprep.subr.mxu0 0.0
        %533 = vmatpush1.msra.mxu0 0.0
        %534 = vmatprep.subr.mxu0 0.0
        %535 = vmatpush1.msra.mxu0 0.0
        %536 = vmatprep.subr.mxu0 0.0
        %537 = vmatpush1.msra.mxu0 0.0
        %538 = vmatprep.subr.mxu0 0.0
        %539 = vmatpush1.msra.mxu0 0.0
        %540 = vmatprep.subr.mxu0 0.0
        %541 = vmatpush1.msra.mxu0 0.0
        %542 = vmatprep.subr.mxu0 0.0
        %543 = vmatpush1.msra.mxu0 0.0
        %544 = vmatprep.subr.mxu0 0.0
        %545 = vmatpush1.msra.mxu0 0.0
        %546 = vmatprep.subr.mxu0 0.0
        %547 = vmatpush1.msra.mxu0 0.0
        %548 = vmatprep.subr.mxu0 0.0
        %549 = vmatpush1.msra.mxu0 0.0
        %550 = vmatprep.subr.mxu0 0.0
        %551 = vmatpush1.msra.mxu0 0.0
        %552 = vmatprep.subr.mxu0 0.0
        %553 = vmatpush1.msra.mxu0 0.0
        %554 = vmatprep.subr.mxu0 0.0
        %555 = vmatpush1.msra.mxu0 0.0
        %556 = vmatprep.subr.mxu0 0.0
        %557 = vmatpush1.msra.mxu0 0.0
        %558 = vmatprep.subr.mxu0 0.0
        %559 = vmatpush1.msra.mxu0 0.0
        %560 = vmatprep.subr.mxu0 0.0
        %561 = vmatpush1.msra.mxu0 0.0
        %562 = vmatprep.subr.mxu0 0.0
        %563 = vmatpush1.msra.mxu0 0.0
        %564 = vmatprep.subr.mxu0 0.0
        %565 = vmatpush1.msra.mxu0 0.0
        %566 = vmatprep.subr.mxu0 0.0
        %567 = vmatpush1.msra.mxu0 0.0
        %568 = vmatprep.subr.mxu0 0.0
        %569 = vmatpush1.msra.mxu0 0.0
        %570 = vmatprep.subr.mxu0 0.0
        %571 = vmatpush1.msra.mxu0 0.0
        %572 = vmatprep.subr.mxu0 0.0
        %573 = vmatpush1.msra.mxu0 0.0
        %574 = vmatprep.mubr.f32.mxu0 0.0
        %575 = vmatmul.mubr.f32.gmra.mrb[0].mxu0 %v501
        %v576 = vpop.f32.mrb[0].mxu0
        %v577 = vadd.f32 %v497, %v576
        %v578 = vpop.f32.mrb[0].mxu0
        %v579 = vadd.f32 %v497, %v578
        %580 = vdwg.mxu0
        %v581 = vmax.f32 %v577, 0.0
        %v582 = vmax.f32 %v579, 0.0
        %583 = vst [vmem:[#allocation4] sm:$0xff] 0.0
        %584 = vst [vmem:[#allocation4 + $0x8] sm:$0xff] 0.0
        %vm585 = vcmask 277504
        %586 = vst.msk [vmem:[#allocation4 + $0x10] sm:$0xff] %vm585, 0.0
        %589 = vrot.lane.b32.xlu0 %v581, 17
        %v590 = vpop.permute.xlu0 %589
        %591 = vrot.lane.b32.xlu0 %v582, 17
        %v592 = vpop.permute.xlu0 %591
        %v593 = vsel %vm274, %v590, %v592
        %vm597 = vcmask 1047688
        %598 = vst.msk [vmem:[#allocation4] sm:$0xff] %vm597, %v590
        %599 = vst [vmem:[#allocation4 + $0x8] sm:$0xff] %v593
        %600 = vst.msk [vmem:[#allocation4 + $0x10] sm:$0xff] %vm274, %v592
        %v601 = vld [vmem:[#allocation4] sm:$0xff]
        %v602 = vld [vmem:[#allocation4 + $0x8] sm:$0xff]
        %v603 = vsel %vm294, %v601, 0.0
        %v604 = vsel %vm295, %v602, 0.0
        %605 = vst [vmem:[#allocation5] sm:$0xff] %v603
        %606 = vst [vmem:[#allocation5 + $0x8] sm:$0xff] %v604
        %v607 = vld [vmem:[#allocation4] sm:$0xff]
        %v608 = vld [vmem:[#allocation4 + $0x8] sm:$0xff]
        %v609 = vld [vmem:[#allocation4 + $0x10] sm:$0xff]
        %613 = vrot.lane.b32.xlu0 %v607, 127
        %v614 = vpop.permute.xlu0 %613
        %615 = vrot.lane.b32.xlu0 %v608, 127
        %v616 = vpop.permute.xlu0 %615
        %617 = vrot.lane.b32.xlu0 %v609, 127
        %v618 = vpop.permute.xlu0 %617
        %v619 = vsel %vm315, %v614, %v616
        %v620 = vsel %vm315, %v616, %v618
        %623 = vst [vmem:[#allocation5 + $0x10] sm:$0xff] %v619
        %624 = vst [vmem:[#allocation5 + $0x18] sm:$0xff] %v620
        %v625 = vld [vmem:[#allocation4] sm:$0xff]
        %v626 = vld [vmem:[#allocation4 + $0x8] sm:$0xff]
        %v627 = vld [vmem:[#allocation4 + $0x10] sm:$0xff]
        %631 = vrot.lane.b32.xlu0 %v625, 126
        %v632 = vpop.permute.xlu0 %631
        %633 = vrot.lane.b32.xlu0 %v626, 126
        %v634 = vpop.permute.xlu0 %633
        %635 = vrot.lane.b32.xlu0 %v627, 126
        %v636 = vpop.permute.xlu0 %635
        %v637 = vsel %vm344, %v632, %v634
        %v638 = vsel %vm344, %v634, %v636
        %v641 = vsel %vm333, %v637, 0.0
        %v642 = vsel %vm334, %v638, 0.0
        %643 = vst [vmem:[#allocation5 + $0x20] sm:$0xff] %v641
        %644 = vst [vmem:[#allocation5 + $0x28] sm:$0xff] %v642
        %v645 = vld [vmem:[#allocation4] sm:$0xff]
        %v646 = vld [vmem:[#allocation4 + $0x8] sm:$0xff]
        %v647 = vld [vmem:[#allocation4 + $0x10] sm:$0xff]
        %651 = vrot.lane.b32.xlu0 %v645, 112
        %v652 = vpop.permute.xlu0 %651
        %653 = vrot.lane.b32.xlu0 %v646, 112
        %v654 = vpop.permute.xlu0 %653
        %655 = vrot.lane.b32.xlu0 %v647, 112
        %v656 = vpop.permute.xlu0 %655
        %v657 = vsel %vm364, %v652, %v654
        %v658 = vsel %vm364, %v654, %v656
        %v661 = vsel %vm294, %v657, 0.0
        %v662 = vsel %vm295, %v658, 0.0
        %663 = vst [vmem:[#allocation5 + $0x30] sm:$0xff] %v661
        %664 = vst [vmem:[#allocation5 + $0x38] sm:$0xff] %v662
        %v665 = vld [vmem:[#allocation4] sm:$0xff]
        %v666 = vld [vmem:[#allocation4 + $0x8] sm:$0xff]
        %v667 = vld [vmem:[#allocation4 + $0x10] sm:$0xff]
        %671 = vrot.lane.b32.xlu0 %v665, 111
        %v672 = vpop.permute.xlu0 %671
        %673 = vrot.lane.b32.xlu0 %v666, 111
        %v674 = vpop.permute.xlu0 %673
        %675 = vrot.lane.b32.xlu0 %v667, 111
        %v676 = vpop.permute.xlu0 %675
        %v677 = vsel %vm390, %v672, %v674
        %v678 = vsel %vm390, %v674, %v676
        %681 = vst [vmem:[#allocation5 + $0x40] sm:$0xff] %v677
        %682 = vst [vmem:[#allocation5 + $0x48] sm:$0xff] %v678
        %v683 = vld [vmem:[#allocation4] sm:$0xff]
        %v684 = vld [vmem:[#allocation4 + $0x8] sm:$0xff]
        %v685 = vld [vmem:[#allocation4 + $0x10] sm:$0xff]
        %689 = vrot.lane.b32.xlu0 %v683, 110
        %v690 = vpop.permute.xlu0 %689
        %691 = vrot.lane.b32.xlu0 %v684, 110
        %v692 = vpop.permute.xlu0 %691
        %693 = vrot.lane.b32.xlu0 %v685, 110
        %v694 = vpop.permute.xlu0 %693
        %v695 = vsel %vm408, %v690, %v692
        %v696 = vsel %vm408, %v692, %v694
        %v699 = vsel %vm333, %v695, 0.0
        %v700 = vsel %vm334, %v696, 0.0
        %701 = vst [vmem:[#allocation5 + $0x50] sm:$0xff] %v699
        %702 = vst [vmem:[#allocation5 + $0x58] sm:$0xff] %v700
        %v703 = vld [vmem:[#allocation4] sm:$0xff]
        %v704 = vld [vmem:[#allocation4 + $0x8] sm:$0xff]
        %v705 = vld [vmem:[#allocation4 + $0x10] sm:$0xff]
        %709 = vrot.lane.b32.xlu0 %v703, 96
        %v710 = vpop.permute.xlu0 %709
        %711 = vrot.lane.b32.xlu0 %v704, 96
        %v712 = vpop.permute.xlu0 %711
        %713 = vrot.lane.b32.xlu0 %v705, 96
        %v714 = vpop.permute.xlu0 %713
        %v715 = vsel %vm434, %v710, %v712
        %v716 = vsel %vm434, %v712, %v714
        %v719 = vsel %vm294, %v715, 0.0
        %v720 = vsel %vm295, %v716, 0.0
        %721 = vst [vmem:[#allocation5 + $0x60] sm:$0xff] %v719
        %722 = vst [vmem:[#allocation5 + $0x68] sm:$0xff] %v720
        %v723 = vld [vmem:[#allocation4] sm:$0xff]
        %v724 = vld [vmem:[#allocation4 + $0x8] sm:$0xff]
        %v725 = vld [vmem:[#allocation4 + $0x10] sm:$0xff]
        %729 = vrot.lane.b32.xlu0 %v723, 95
        %v730 = vpop.permute.xlu0 %729
        %731 = vrot.lane.b32.xlu0 %v724, 95
        %v732 = vpop.permute.xlu0 %731
        %733 = vrot.lane.b32.xlu0 %v725, 95
        %v734 = vpop.permute.xlu0 %733
        %v735 = vsel %vm455, %v730, %v732
        %v736 = vsel %vm455, %v732, %v734
        %739 = vst [vmem:[#allocation5 + $0x70] sm:$0xff] %v735
        %740 = vst [vmem:[#allocation5 + $0x78] sm:$0xff] %v736
        %v741 = vld [vmem:[#allocation4] sm:$0xff]
        %v742 = vld [vmem:[#allocation4 + $0x8] sm:$0xff]
        %v743 = vld [vmem:[#allocation4 + $0x10] sm:$0xff]
        %747 = vrot.lane.b32.xlu0 %v741, 94
        %v748 = vpop.permute.xlu0 %747
        %749 = vrot.lane.b32.xlu0 %v742, 94
        %v750 = vpop.permute.xlu0 %749
        %751 = vrot.lane.b32.xlu0 %v743, 94
        %v752 = vpop.permute.xlu0 %751
        %v753 = vsel %vm473, %v748, %v750
        %v754 = vsel %vm473, %v750, %v752
        %v757 = vsel %vm333, %v753, 0.0
        %v758 = vsel %vm334, %v754, 0.0
        %759 = vst [vmem:[#allocation5 + $0x80] sm:$0xff] %v757
        %760 = vst [vmem:[#allocation5 + $0x88] sm:$0xff] %v758
        %v761 = vld [vmem:[%s4] sm:$0xff]
        %v762 = vld [vmem:[#allocation5] sm:$0xff]
        %v763 = vld [vmem:[#allocation5 + $0x8] sm:$0xff]
        %v764 = vld [vmem:[#allocation5 + $0x10] sm:$0xff]
        %v765 = vld [vmem:[#allocation5 + $0x18] sm:$0xff]
        %v766 = vld [vmem:[#allocation5 + $0x20] sm:$0xff]
        %v767 = vld [vmem:[#allocation5 + $0x28] sm:$0xff]
        %v768 = vld [vmem:[#allocation5 + $0x30] sm:$0xff]
        %v769 = vld [vmem:[#allocation5 + $0x38] sm:$0xff]
        %v770 = vld [vmem:[#allocation5 + $0x40] sm:$0xff]
        %v771 = vld [vmem:[#allocation5 + $0x48] sm:$0xff]
        %v772 = vld [vmem:[#allocation5 + $0x50] sm:$0xff]
        %v773 = vld [vmem:[#allocation5 + $0x58] sm:$0xff]
        %v774 = vld [vmem:[#allocation5 + $0x60] sm:$0xff]
        %v775 = vld [vmem:[#allocation5 + $0x68] sm:$0xff]
        %v776 = vld [vmem:[#allocation5 + $0x70] sm:$0xff]
        %v777 = vld [vmem:[#allocation5 + $0x78] sm:$0xff]
        %v778 = vld [vmem:[#allocation5 + $0x80] sm:$0xff]
        %v779 = vld [vmem:[#allocation5 + $0x88] sm:$0xff]
        %v780 = vld [vmem:[%s5] sm:$0xff]
        %782 = vset.pattern.permute.xlu0 0
        %783 = vperm.xlu0 %782, %v780
        %v784 = vpop.permute.xlu0 %783
        %vm786 = vcmask 588800
        %v788 = vsel %vm786, %v761, 0
        %790 = vmatprep.subr.mxu0 %v763
        %791 = vmatpush1.msra.mxu0 %v762
        %792 = vmatprep.subr.mxu0 %v765
        %793 = vmatpush1.msra.mxu0 %v764
        %794 = vmatprep.subr.mxu0 %v767
        %795 = vmatpush1.msra.mxu0 %v766
        %796 = vmatprep.subr.mxu0 %v769
        %797 = vmatpush1.msra.mxu0 %v768
        %798 = vmatprep.subr.mxu0 %v771
        %799 = vmatpush1.msra.mxu0 %v770
        %800 = vmatprep.subr.mxu0 %v773
        %801 = vmatpush1.msra.mxu0 %v772
        %802 = vmatprep.subr.mxu0 %v775
        %803 = vmatpush1.msra.mxu0 %v774
        %804 = vmatprep.subr.mxu0 %v777
        %805 = vmatpush1.msra.mxu0 %v776
        %806 = vmatprep.subr.mxu0 %v779
        %807 = vmatpush1.msra.mxu0 %v778
        %808 = vmatprep.subr.mxu0 0.0
        %809 = vmatpush1.msra.mxu0 0.0
        %810 = vmatprep.subr.mxu0 0.0
        %811 = vmatpush1.msra.mxu0 0.0
        %812 = vmatprep.subr.mxu0 0.0
        %813 = vmatpush1.msra.mxu0 0.0
        %814 = vmatprep.subr.mxu0 0.0
        %815 = vmatpush1.msra.mxu0 0.0
        %816 = vmatprep.subr.mxu0 0.0
        %817 = vmatpush1.msra.mxu0 0.0
        %818 = vmatprep.subr.mxu0 0.0
        %819 = vmatpush1.msra.mxu0 0.0
        %820 = vmatprep.subr.mxu0 0.0
        %821 = vmatpush1.msra.mxu0 0.0
        %822 = vmatprep.subr.mxu0 0.0
        %823 = vmatpush1.msra.mxu0 0.0
        %824 = vmatprep.subr.mxu0 0.0
        %825 = vmatpush1.msra.mxu0 0.0
        %826 = vmatprep.subr.mxu0 0.0
        %827 = vmatpush1.msra.mxu0 0.0
        %828 = vmatprep.subr.mxu0 0.0
        %829 = vmatpush1.msra.mxu0 0.0
        %830 = vmatprep.subr.mxu0 0.0
        %831 = vmatpush1.msra.mxu0 0.0
        %832 = vmatprep.subr.mxu0 0.0
        %833 = vmatpush1.msra.mxu0 0.0
        %834 = vmatprep.subr.mxu0 0.0
        %835 = vmatpush1.msra.mxu0 0.0
        %836 = vmatprep.subr.mxu0 0.0
        %837 = vmatpush1.msra.mxu0 0.0
        %838 = vmatprep.subr.mxu0 0.0
        %839 = vmatpush1.msra.mxu0 0.0
        %840 = vmatprep.subr.mxu0 0.0
        %841 = vmatpush1.msra.mxu0 0.0
        %842 = vmatprep.subr.mxu0 0.0
        %843 = vmatpush1.msra.mxu0 0.0
        %844 = vmatprep.subr.mxu0 0.0
        %845 = vmatpush1.msra.mxu0 0.0
        %846 = vmatprep.subr.mxu0 0.0
        %847 = vmatpush1.msra.mxu0 0.0
        %848 = vmatprep.subr.mxu0 0.0
        %849 = vmatpush1.msra.mxu0 0.0
        %850 = vmatprep.subr.mxu0 0.0
        %851 = vmatpush1.msra.mxu0 0.0
        %852 = vmatprep.subr.mxu0 0.0
        %853 = vmatpush1.msra.mxu0 0.0
        %854 = vmatprep.mubr.f32.mxu0 0.0
        %855 = vmatmul.mubr.f32.gmra.mrb[0].mxu0 %v788
        %v856 = vpop.f32.mrb[0].mxu0
        %v857 = vadd.f32 %v784, %v856
        %v858 = vpop.f32.mrb[0].mxu0
        %v859 = vadd.f32 %v784, %v858
        %860 = vdwg.mxu0
        %v861 = vmax.f32 %v857, 0.0
        %v862 = vmax.f32 %v859, 0.0
        %863 = vst [vmem:[%s257] sm:$0xff] %v861
        %864 = vst [vmem:[%s257 + $0x8] sm:$0xff] %v862
        %s865 = sand.u32 %s160, 1
        %s866 = scalar_lea.sflag [#allocation8], %s865
        %s867 = sand.u32 %s160, 1
        %s868 = smul.addr %s867, 16
        %s869 = scalar_lea.vmem [#allocation9], %s868
        // Predicated region
        $region49: #{tpu_custom_call.1} parent=43 // pred_check
          %p870 = pneg %p170
        $region50: #{tpu_custom_call.1} parent=43 // pred_check_branch
          %872 = sbr.rel (%p870) target = $region52
        $region51: #{tpu_custom_call.1} parent=43 // pred_region
          %s874 = ssub.s32 256, 256
          %875 = vsyncadd %s866, %s874
          %s876 = smul.addr %s21, 2
          %s877 = smul.addr %s876, 128
          %s878 = scalar_lea.hbm %s6, %s877
          %s880 = sshll.u32 %s869, 4
          %s881 = int_to_ptr.vmem [resolvable:$true] %s880
          %883 = dma.vmem_to_hbm [thread:$0]  %s881, 256, %s878, %s866
        $region52: #{tpu_custom_call.1} parent=43 // pred_fallthru
          _
      $region44: #{tpu_custom_call.1} parent=5 // pred_fallthru
        _
      %p884 = scmp.le.s32.totalorder 2, %s16
      // Predicated region
      $region53: #{tpu_custom_call.1} parent=5 // pred_check
        %p885 = pneg %p884
      $region54: #{tpu_custom_call.1} parent=5 // pred_check_branch
        %887 = sbr.rel (%p885) target = $region56
      $region55: #{tpu_custom_call.1} parent=5 // pred_region
        %s888 = ssub.s32 %s16, 2
        // Predicated region
        $region57: #{tpu_custom_call.1} parent=55 // pred_check
          %p889 = pneg %p176
        $region58: #{tpu_custom_call.1} parent=55 // pred_check_branch
          %891 = sbr.rel (%p889) target = $region60
        $region59: #{tpu_custom_call.1} parent=55 // pred_region
          %s892 = sand.u32 %s161, 1
          %s893 = scalar_lea.sflag [#allocation8], %s892
          %s894 = sand.u32 %s161, 1
          %s895 = smul.addr %s894, 16
          %s896 = scalar_lea.vmem [#allocation9], %s895
          %897 = dma.done %s893, 256
        $region60: #{tpu_custom_call.1} parent=55 // pred_fallthru
          _
      $region56: #{tpu_custom_call.1} parent=5 // pred_fallthru
        _
    $region6: #{tpu_custom_call.1} parent=1 // loop_footer
      %s20 = sadd.s32 1, %s16
    $region7: #{tpu_custom_call.1} parent=1 // loop_footer_branch
      %15 = sbr.rel target = $region3
    $region8: #{tpu_custom_call.1} parent=1 // loop_exit
      _
    %898 = vsyncpa [#allocation7], 1
    %s899 = scalar_lea.sflag [#allocation7], 1
    %900 = vsyncpa %s899, 1
    %901 = vsyncpa [#allocation8], 1
    %s902 = scalar_lea.sflag [#allocation8], 1
    %903 = vsyncpa %s902, 1

</llo_original>
